<compile_context>
chip_gen: v7x
topology: tpu7x:2x2x1
jax: 0.10.0
libtpu: 0.0.40
codegen_flags: <defaults>
</compile_context>

<pallas_src>
import functools

import jax
import jax.numpy as jnp
from jax import lax
from jax.experimental import pallas as pl
from jax.experimental.pallas import tpu as pltpu


def _round_up(x: int, m: int) -> int:
    return ((x + m - 1) // m) * m


def _choose_batch_tile(c_max: int, s_pad: int, budget_bytes: int = 20 << 20) -> int:
    """Largest multiple-of-8 batch tile whose per-step working set fits a VMEM
    budget that is safe on v5e/v6e (128 MiB) *and* v7x (64 MiB physical)."""
    c_sub = _round_up(c_max, 8)
    per_row = (
        3 * c_sub * s_pad * 4          # (TB, C, S) compare/select temporaries
        + 2 * (c_max + s_pad) * 4      # double-buffered x / idx blocks
        + 2 * s_pad * 4                # resident (accumulating) output block
    )
    tb = (budget_bytes // per_row) // 8 * 8
    return int(max(8, min(tb, 1024)))


def _result_probs_kernel(loss_aggregator, x_ref, idx_ref, out_ref):
    """Grid = (batch_tiles, n_inputs).  The input axis is a reduction
    ("arbitrary"); the output block stays resident in VMEM across it.

       x_ref:   (1, TB, C)  f32  probabilities of input pl.program_id(1)
       idx_ref: (1, TB, S)  i32  sampled indices of input pl.program_id(1)
       out_ref: (TB, S)     f32  running aggregate (result_probs tile)
    """
    @pl.when(pl.program_id(1) == 0)
    def _():
        # result_probs starts as ones((n_permutations=1, B, S)); the size-1
        # permutation axis makes the final torch.sum(dim=0) an identity.
        out_ref[...] = jnp.ones_like(out_ref)

    x = x_ref[0]       # (TB, C)
    idx = idx_ref[0]   # (TB, S)
    tb, c = x.shape
    s = idx.shape[-1]

    # Gather proof[b, s] = x[b, idx[b, s]]  (== torch.gather(x, 1, idx)),
    # expressed as a fused compare+select reduce.  The category axis sits on
    # sublanes and the sample axis on lanes, so the (TB, C, S) intermediate
    # costs ~ceil(C/8) sublane rows per lane group (vs. ceil(S/8) for the
    # (TB, S, C) layout) and the reduce is a cheap sublane reduce.
    c_iota = lax.broadcasted_iota(jnp.int32, (tb, c, s), 1)
    match = idx[:, None, :] == c_iota                       # (TB, C, S) bool
    proof = jnp.sum(jnp.where(match, x[:, :, None], 0.0), axis=1)  # (TB, S)

    if loss_aggregator == "add_mult":
        out_ref[...] = out_ref[...] * proof
    else:  # "min_max"
        out_ref[...] = jnp.minimum(out_ref[...], proof)


def blackbox_result_probs(inputs, indices, loss_aggregator="add_mult"):
    """Computes `result_probs` of BlackBoxFunction.forward with a Pallas kernel.

    inputs:  list of (B, C_i) float probability tensors (C_i may differ).
    indices: list of (B, S) int sampled indices (one per input, values < C_i).
    Returns: (B, S) float32 result_probs.
    """
    assert loss_aggregator in ("add_mult", "min_max"), loss_aggregator
    n = len(inputs)
    assert n == len(indices) and n >= 1
    batch, sample_count = indices[0].shape
    c_max = max(int(x.shape[1]) for x in inputs)
    for x, idx in zip(inputs, indices):
        assert x.shape[0] == batch
        assert idx.shape == (batch, sample_count)
    # NOTE: like torch.gather we assume indices are in-range; out-of-range
    # indices would silently contribute 0.0 to the one-hot gather.

    # Lane-dense sample axis (unmasked stores) and sublane-aligned batch tile.
    s_pad = _round_up(sample_count, 128)
    tb = _choose_batch_tile(c_max, s_pad)
    tb = min(tb, _round_up(batch, 8))
    b_pad = _round_up(batch, tb)

    # Stack (and zero-pad) everything into one input stream per kind:
    #   x_stk  : (N, B_pad, C_max) f32   (padded columns are never gathered)
    #   idx_stk: (N, B_pad, S_pad) i32   (padded positions gather col 0, sliced off)
    x_stk = jnp.zeros((n, b_pad, c_max), jnp.float32)
    idx_stk = jnp.zeros((n, b_pad, s_pad), jnp.int32)
    for i, (x, idx) in enumerate(zip(inputs, indices)):
        x_stk = x_stk.at[i, :batch, : x.shape[1]].set(x.astype(jnp.float32))
        idx_stk = idx_stk.at[i, :batch, :sample_count].set(idx.astype(jnp.int32))

    kernel = functools.partial(_result_probs_kernel, loss_aggregator)
    out = pl.pallas_call(
        kernel,
        out_shape=jax.ShapeDtypeStruct((b_pad, s_pad), jnp.float32),
        grid=(b_pad // tb, n),
        in_specs=[
            pl.BlockSpec((1, tb, c_max), lambda b, i: (i, b, 0)),
            pl.BlockSpec((1, tb, s_pad), lambda b, i: (i, b, 0)),
        ],
        out_specs=pl.BlockSpec((tb, s_pad), lambda b, i: (b, 0)),
        compiler_params=pltpu.CompilerParams(
            dimension_semantics=("parallel", "arbitrary"),
            vmem_limit_bytes=32 << 20,
        ),
    )(x_stk, idx_stk)
    return out[:batch, :sample_count]


# TODO(synk): the Python black-box `function` invocation, InputMapping.sample,
# OutputMapping.vectorize and the itertools/random permutation probing are
# host-side / arbitrary-Python logic with no Pallas equivalent; only the
# gather + aggregate tensor path is implemented here.


if __name__ == "__main__":
    key = jax.random.PRNGKey(0)
    batch = 2
    sample_count = 100        # BlackBoxFunction default sample_count
    num_categories = [10, 6]  # two input mappings with different category counts
    num_inputs = len(num_categories)

    keys = jax.random.split(key, 2 * num_inputs)
    inputs, indices = [], []
    for i, c in enumerate(num_categories):
        logits = jax.random.normal(keys[2 * i], (batch, c), jnp.float32)
        probs = jax.nn.softmax(logits, axis=-1)           # what InputMapping works on
        idx = jax.random.randint(                         # stands in for InputMapping.sample
            keys[2 * i + 1], (batch, sample_count), 0, c, dtype=jnp.int32
        )
        inputs.append(probs)
        indices.append(idx)

    ok = True
    for agg in ("add_mult", "min_max"):
        out = blackbox_result_probs(inputs, indices, loss_aggregator=agg)
        out = jax.block_until_ready(out)

        # Pure-JAX reference of the same hot path (torch.gather + aggregate + sum(dim=0)).
        ref = jnp.ones((batch, sample_count), jnp.float32)
        for x, idx in zip(inputs, indices):
            g = jnp.take_along_axis(x, idx, axis=1)
            ref = ref * g if agg == "add_mult" else jnp.minimum(ref, g)

        ok &= bool(out.shape == (batch, sample_count))
        ok &= bool(jnp.allclose(out, ref, atol=1e-6, rtol=1e-6))

    assert ok
    print("KERNEL_OK")
</pallas_src>

<mosaic_0001>
module attributes {stable_mosaic.version = 11 : i64} {
  func.func @_result_probs_kernel(%arg0: i32, %arg1: i32, %arg2: memref<1x8x10xf32, #tpu.memory_space<vmem>>, %arg3: memref<1x8x128xi32, #tpu.memory_space<vmem>>, %arg4: memref<8x128xf32, #tpu.memory_space<vmem>>) attributes {dimension_semantics = [#tpu.dimension_semantics<parallel>, #tpu.dimension_semantics<arbitrary>], iteration_bounds = array<i64: 1, 2>, scalar_prefetch = 0 : i64, scratch_operands = 0 : i64, tpu.core_type = #tpu.core_type<tc>, window_params = [{transform_indices = @transform_0, window_bounds = array<i64: 1, 8, 10>}, {transform_indices = @transform_1, window_bounds = array<i64: 1, 8, 128>}, {transform_indices = @transform_2, window_bounds = array<i64: 8, 128>}]} {
    %c0_i32 = arith.constant 0 : i32
    %0 = arith.cmpi eq, %arg1, %c0_i32 : i32
    %1 = arith.extui %0 : i1 to i32
    %c0_i32_0 = arith.constant 0 : i32
    %2 = arith.cmpi ne, %1, %c0_i32_0 : i32
    scf.if %2 {
      %cst_11 = arith.constant 1.000000e+00 : f32
      %20 = vector.broadcast %cst_11 : f32 to vector<8x128xf32>
      %c0_12 = arith.constant 0 : index
      %c0_13 = arith.constant 0 : index
      %21 = vector.load %arg4[%c0_12, %c0_13] : memref<8x128xf32, #tpu.memory_space<vmem>>, vector<8x128xf32>
      tpu.vector_store %arg4[%c0_12, %c0_13], %20 {strides = array<i32>} : memref<8x128xf32, #tpu.memory_space<vmem>>, vector<8x128xf32>,
    } else {
    }
    %c0 = arith.constant 0 : index
    %c0_1 = arith.constant 0 : index
    %c0_2 = arith.constant 0 : index
    %3 = vector.load %arg2[%c0, %c0_1, %c0_2] : memref<1x8x10xf32, #tpu.memory_space<vmem>>, vector<1x8x10xf32>
    %4 = vector.shape_cast %3 : vector<1x8x10xf32> to vector<8x10xf32>
    %c0_3 = arith.constant 0 : index
    %c0_4 = arith.constant 0 : index
    %c0_5 = arith.constant 0 : index
    %5 = vector.load %arg3[%c0_3, %c0_4, %c0_5] : memref<1x8x128xi32, #tpu.memory_space<vmem>>, vector<1x8x128xi32>
    %6 = vector.shape_cast %5 : vector<1x8x128xi32> to vector<8x128xi32>
    %7 = tpu.iota {dimensions = array<i32: 1>} : vector<8x10x128xi32>
    %8 = vector.shape_cast %6 : vector<8x128xi32> to vector<8x1x128xi32>
    %9 = vector.broadcast %8 : vector<8x1x128xi32> to vector<8x10x128xi32>
    %10 = arith.cmpi eq, %9, %7 : vector<8x10x128xi32>
    %11 = vector.shape_cast %4 : vector<8x10xf32> to vector<8x10x1xf32>
    %cst = arith.constant 0.000000e+00 : f32
    %12 = vector.shape_cast %11 : vector<8x10x1xf32> to vector<8x10x1xf32>
    %13 = vector.broadcast %12 : vector<8x10x1xf32> to vector<8x10x128xf32>
    %14 = vector.broadcast %cst : f32 to vector<8x10x128xf32>
    %15 = arith.select %10, %13, %14 : vector<8x10x128xi1>, vector<8x10x128xf32>
    %cst_6 = arith.constant dense<0.000000e+00> : vector<8x128xf32>
    %16 = vector.multi_reduction <add>, %15, %cst_6 [1] : vector<8x10x128xf32> to vector<8x128xf32>
    %c0_7 = arith.constant 0 : index
    %c0_8 = arith.constant 0 : index
    %17 = vector.load %arg4[%c0_7, %c0_8] : memref<8x128xf32, #tpu.memory_space<vmem>>, vector<8x128xf32>
    %18 = arith.mulf %17, %16 : vector<8x128xf32>
    %c0_9 = arith.constant 0 : index
    %c0_10 = arith.constant 0 : index
    %19 = vector.load %arg4[%c0_9, %c0_10] : memref<8x128xf32, #tpu.memory_space<vmem>>, vector<8x128xf32>
    tpu.vector_store %arg4[%c0_9, %c0_10], %18 {strides = array<i32>} : memref<8x128xf32, #tpu.memory_space<vmem>>, vector<8x128xf32>,
    return
  }
  func.func @transform_0(%arg0: i32, %arg1: i32) -> (i32, i32, i32) {
    %c0_i32 = arith.constant 0 : i32
    %c0_i32_0 = arith.constant 0 : i32
    return %arg1, %arg0, %c0_i32 : i32, i32, i32
  }
  func.func @transform_1(%arg0: i32, %arg1: i32) -> (i32, i32, i32) {
    %c0_i32 = arith.constant 0 : i32
    %c0_i32_0 = arith.constant 0 : i32
    return %arg1, %arg0, %c0_i32 : i32, i32, i32
  }
  func.func @transform_2(%arg0: i32, %arg1: i32) -> (i32, i32) {
    %c0_i32 = arith.constant 0 : i32
    %c0_i32_0 = arith.constant 0 : i32
    return %arg0, %c0_i32 : i32, i32
  }
}

</mosaic_0001>

<llo_original>
// kernel: tpu_custom_call.1
$region0: #{tpu_custom_call.1}
  #allocation0 [shape = 'u32[]', space=smem, size = 0x4, offset = 0x4, fixed_abs, tag = 'smem constant byte address 0x4 - core index']
  #allocation1 [shape = 'u32[144,128]{1,0:T(1,128)}', space=vmem, size = 0x12000, scoped, tag = 'internal scratch']
  %s0 = inlined_call_operand.hbm [shape: f32[2,8,10], index: 0, kind: input, shape index: {}]
  %s1 = inlined_call_operand.hbm [shape: s32[2,8,128], index: 1, kind: input, shape index: {}]
  %s2 = inlined_call_operand.hbm [shape: f32[8,128], index: 2, kind: output, shape index: {}]
  %s3 = sld [smem:[#allocation0]]
  $region53: #{tpu_custom_call.1} parent=0
    _
  %s5 = ssub.s32 1, %s3
  %s6 = scalar_select 0, %s5, %s3
  $region1: #{tpu_custom_call.1} parent=0
    #allocation2 [shape = 'u8[8192]{0}', space=vmem, size = 0x2000, scoped, tag = 'input window, operand 0']
    #allocation3 [shape = 's32[2]{0}', space=sflag, size = 0x8, scoped, tag = 'scoped memory for tpu_custom_call.1']
    #allocation4 [shape = 's32[2]{0}', space=sflag, size = 0x8, scoped, tag = 'scoped memory for tpu_custom_call.1']
    #allocation5 [shape = 'u8[8192]{0}', space=vmem, size = 0x2000, scoped, tag = 'input window, operand 1']
    #allocation6 [shape = 's32[2]{0}', space=sflag, size = 0x8, scoped, tag = 'scoped memory for tpu_custom_call.1']
    #allocation7 [shape = 'u8[4096]{0}', space=vmem, size = 0x1000, scoped, tag = 'output window, operand 0, single buffered']
    %7 = vsyncpa [#allocation3], 0
    %s8 = scalar_lea.sflag [#allocation3], 1
    %9 = vsyncpa %s8, 0
    %10 = vsyncpa [#allocation6], 0
    %s11 = scalar_lea.sflag [#allocation6], 1
    %12 = vsyncpa %s11, 0
    %13 = vsyncpa [#allocation4], 0
    loop: start=0, step=1, limit=4
    $region2: #{tpu_custom_call.1} parent=1 // loop_pre_header
      _
    $region3: #{tpu_custom_call.1} parent=1 // loop_header
      %s15 = sphi 0, %s19
      %p16 = scmp.ge.s32.totalorder %s15, 4
      %s22 = sphi 0, %s34
      %s23 = sphi 0, %s30
      %s24 = sphi 0, %s22
      %s25 = sphi 0, %s23
      %s26 = sphi 0, %s24
      %s27 = sphi 0, %s25
      %s39 = sphi 0, %s41
      %s42 = sphi 0, %s39
      %s43 = sphi 0, %s42
      %s59 = sphi 0, %s43
      %s67 = sphi 0, %s69
      %s70 = sphi 0, %s67
      %s71 = sphi 0, %s70
      %s87 = sphi 0, %s71
      %s93 = sphi 0, %s95
      %s96 = sphi 0, %s93
      %s97 = sphi 0, %s96
      %s113 = sphi 0, %s97
    $region4: #{tpu_custom_call.1} parent=1 // loop_header_branch
      %18 = sbr.rel (%p16) target = $region8
    $region5: #{tpu_custom_call.1} parent=1 // loop_body
      %s20 = ssub.s32 %s15, 1
      %s21 = ssub.s32 %s15, 2
      %s28 = sadd.s32 1, %s23
      %p29 = scmp.ge.s32.totalorder %s28, 2
      %s30 = scalar_select %p29, 0, %s28
      %s31 = sadd.s32 1, %s22
      %s32 = scalar_select %p29, %s31, %s22
      %p33 = scmp.ge.s32.totalorder %s32, 1
      %s34 = scalar_select %p33, 0, %s32
      %s35 = ssub.s32 %s23, %s30
      %s36 = ssub.s32 %s22, %s34
      %s37 = sor.u32 %s35, %s36
      %p38 = scmp.eq.s32.totalorder %s37, 0
      %s40 = sadd.s32 %s39, 1
      %s41 = scalar_select %p38, %s39, %s40
      %p44 = pneg %p38
      %p45 = scmp.eq.s32.totalorder %s15, 1
      %p46 = por %p44, %p45
      %p47 = scmp.ne.s32.totalorder %s39, %s42
      %p48 = scmp.eq.s32.totalorder %s15, 0
      %p49 = por %p47, %p48
      %p50 = scmp.ne.s32.totalorder %s39, %s42
      %p51 = scmp.eq.s32.totalorder %s20, 1
      %p52 = por %p50, %p51
      %p53 = scmp.ne.s32.totalorder %s42, %s43
      %p54 = scmp.eq.s32.totalorder %s20, 0
      %p55 = por %p53, %p54
      %p56 = scmp.ne.s32.totalorder %s42, %s43
      %p57 = scmp.eq.s32.totalorder %s21, 1
      %p58 = por %p56, %p57
      %p60 = scmp.ne.s32.totalorder %s43, %s59
      %p61 = scmp.eq.s32.totalorder %s21, 0
      %p62 = por %p60, %p61
      %s63 = ssub.s32 %s23, %s30
      %s64 = ssub.s32 %s22, %s34
      %s65 = sor.u32 %s63, %s64
      %p66 = scmp.eq.s32.totalorder %s65, 0
      %s68 = sadd.s32 %s67, 1
      %s69 = scalar_select %p66, %s67, %s68
      %p72 = pneg %p66
      %p73 = scmp.eq.s32.totalorder %s15, 1
      %p74 = por %p72, %p73
      %p75 = scmp.ne.s32.totalorder %s67, %s70
      %p76 = scmp.eq.s32.totalorder %s15, 0
      %p77 = por %p75, %p76
      %p78 = scmp.ne.s32.totalorder %s67, %s70
      %p79 = scmp.eq.s32.totalorder %s20, 1
      %p80 = por %p78, %p79
      %p81 = scmp.ne.s32.totalorder %s70, %s71
      %p82 = scmp.eq.s32.totalorder %s20, 0
      %p83 = por %p81, %p82
      %p84 = scmp.ne.s32.totalorder %s70, %s71
      %p85 = scmp.eq.s32.totalorder %s21, 1
      %p86 = por %p84, %p85
      %p88 = scmp.ne.s32.totalorder %s71, %s87
      %p89 = scmp.eq.s32.totalorder %s21, 0
      %p90 = por %p88, %p89
      %s91 = ssub.s32 %s22, %s34
      %p92 = scmp.eq.s32.totalorder %s91, 0
      %s94 = sadd.s32 %s93, 1
      %s95 = scalar_select %p92, %s93, %s94
      %p98 = pneg %p92
      %p99 = scmp.eq.s32.totalorder %s15, 1
      %p100 = por %p98, %p99
      %p101 = scmp.ne.s32.totalorder %s93, %s96
      %p102 = scmp.eq.s32.totalorder %s15, 0
      %p103 = por %p101, %p102
      %p104 = scmp.ne.s32.totalorder %s93, %s96
      %p105 = scmp.eq.s32.totalorder %s20, 1
      %p106 = por %p104, %p105
      %p107 = scmp.ne.s32.totalorder %s96, %s97
      %p108 = scmp.eq.s32.totalorder %s20, 0
      %p109 = por %p107, %p108
      %p110 = scmp.ne.s32.totalorder %s96, %s97
      %p111 = scmp.eq.s32.totalorder %s21, 1
      %p112 = por %p110, %p111
      %p114 = scmp.ne.s32.totalorder %s97, %s113
      %p115 = scmp.eq.s32.totalorder %s21, 0
      %p116 = por %p114, %p115
      %p117 = scmp.le.s32.totalorder 1, %s15
      %p118 = scmp.lt.s32.totalorder %s15, 3
      %p119 = pnand %p117, %p118
      %p120 = pneg %p119
      // Predicated region
      $region9: #{tpu_custom_call.1} parent=5 // pred_check
        _
      $region10: #{tpu_custom_call.1} parent=5 // pred_check_branch
        %122 = sbr.rel (%p119) target = $region12
      $region11: #{tpu_custom_call.1} parent=5 // pred_region
        %s123 = ssub.s32 %s15, 1
      $region12: #{tpu_custom_call.1} parent=5 // pred_fallthru
        _
      %p124 = scmp.lt.s32.totalorder %s15, 2
      // Predicated region
      $region13: #{tpu_custom_call.1} parent=5 // pred_check
        %p125 = pneg %p124
      $region14: #{tpu_custom_call.1} parent=5 // pred_check_branch
        %127 = sbr.rel (%p125) target = $region16
      $region15: #{tpu_custom_call.1} parent=5 // pred_region
        // Predicated region
        $region17: #{tpu_custom_call.1} parent=15 // pred_check
          %p128 = pneg %p49
        $region18: #{tpu_custom_call.1} parent=15 // pred_check_branch
          %130 = sbr.rel (%p128) target = $region20
        $region19: #{tpu_custom_call.1} parent=15 // pred_region
          %s131 = sand.u32 %s39, 1
          %s132 = scalar_lea.sflag [#allocation3], %s131
          %s133 = sand.u32 %s39, 1
          %s134 = smul.addr %s133, 8
          %s135 = scalar_lea.vmem [#allocation2], %s134
          %s137 = ssub.s32 128, 128
          %138 = vsyncadd %s132, %s137
          %s139 = sadd.s32 %s22, %s23
          %s140 = smul.addr %s139, 128
          %s141 = scalar_lea.hbm %s0, %s140
          %s143 = sshll.u32 %s135, 4
          %s144 = int_to_ptr.vmem [resolvable:$true] %s143
          %146 = dma.hbm_to_vmem [thread:$0]  %s141, 128, %s144, %s132
        $region20: #{tpu_custom_call.1} parent=15 // pred_fallthru
          _
        // Predicated region
        $region21: #{tpu_custom_call.1} parent=15 // pred_check
          %p147 = pneg %p77
        $region22: #{tpu_custom_call.1} parent=15 // pred_check_branch
          %149 = sbr.rel (%p147) target = $region24
        $region23: #{tpu_custom_call.1} parent=15 // pred_region
          %s150 = sand.u32 %s67, 1
          %s151 = scalar_lea.sflag [#allocation6], %s150
          %s152 = sand.u32 %s67, 1
          %s153 = smul.addr %s152, 8
          %s154 = scalar_lea.vmem [#allocation5], %s153
          %s156 = ssub.s32 128, 128
          %157 = vsyncadd %s151, %s156
          %s158 = sadd.s32 %s22, %s23
          %s159 = smul.addr %s158, 128
          %s160 = scalar_lea.hbm %s1, %s159
          %s162 = sshll.u32 %s154, 4
          %s163 = int_to_ptr.vmem [resolvable:$true] %s162
          %165 = dma.hbm_to_vmem [thread:$0]  %s160, 128, %s163, %s151
        $region24: #{tpu_custom_call.1} parent=15 // pred_fallthru
          _
      $region16: #{tpu_custom_call.1} parent=5 // pred_fallthru
        _
      %p166 = scmp.le.s32.totalorder 1, %s15
      %p167 = scmp.lt.s32.totalorder %s15, 3
      %p168 = pnand %p166, %p167
      %p169 = pneg %p168
      // Predicated region
      $region25: #{tpu_custom_call.1} parent=5 // pred_check
        _
      $region26: #{tpu_custom_call.1} parent=5 // pred_check_branch
        %171 = sbr.rel (%p168) target = $region28
      $region27: #{tpu_custom_call.1} parent=5 // pred_region
        %s172 = ssub.s32 %s15, 1
        %s173 = sand.u32 %s42, 1
        %s174 = scalar_lea.sflag [#allocation3], %s173
        %s175 = sand.u32 %s42, 1
        %s176 = smul.addr %s175, 8
        %s177 = scalar_lea.vmem [#allocation2], %s176
        // Predicated region
        $region29: #{tpu_custom_call.1} parent=27 // pred_check
          %p178 = pneg %p55
        $region30: #{tpu_custom_call.1} parent=27 // pred_check_branch
          %180 = sbr.rel (%p178) target = $region32
        $region31: #{tpu_custom_call.1} parent=27 // pred_region
          %181 = dma.done %s174, 128
        $region32: #{tpu_custom_call.1} parent=27 // pred_fallthru
          _
        %s182 = sand.u32 %s70, 1
        %s183 = scalar_lea.sflag [#allocation6], %s182
        %s184 = sand.u32 %s70, 1
        %s185 = smul.addr %s184, 8
        %s186 = scalar_lea.vmem [#allocation5], %s185
        // Predicated region
        $region33: #{tpu_custom_call.1} parent=27 // pred_check
          %p187 = pneg %p83
        $region34: #{tpu_custom_call.1} parent=27 // pred_check_branch
          %189 = sbr.rel (%p187) target = $region36
        $region35: #{tpu_custom_call.1} parent=27 // pred_region
          %190 = dma.done %s183, 128
        $region36: #{tpu_custom_call.1} parent=27 // pred_fallthru
          _
        %s191 = sand.u32 %s42, 1
        %s192 = scalar_lea.sflag [#allocation3], %s191
        %s193 = sand.u32 %s42, 1
        %s194 = smul.addr %s193, 8
        %s195 = scalar_lea.vmem [#allocation2], %s194
        %p196 = pneg %p55
        %p197 = pneg %p52
        %s198 = sand.u32 %s70, 1
        %s199 = scalar_lea.sflag [#allocation6], %s198
        %s200 = sand.u32 %s70, 1
        %s201 = smul.addr %s200, 8
        %s202 = scalar_lea.vmem [#allocation5], %s201
        %p203 = pneg %p83
        %p204 = pneg %p80
        %p205 = pneg %p109
        %p206 = pneg %p106
        %p207 = scmp.eq.s32.totalorder %s25, 0
        // Predicated region
        $region37: #{tpu_custom_call.1} parent=27 // pred_check
          %p208 = pneg %p207
        $region38: #{tpu_custom_call.1} parent=27 // pred_check_branch
          %210 = sbr.rel (%p208) target = $region40
        $region39: #{tpu_custom_call.1} parent=27 // pred_region
          %211 = vst [vmem:[#allocation7] sm:$0xff] 1.0
        $region40: #{tpu_custom_call.1} parent=27 // pred_fallthru
          _
        %v212 = vld [vmem:[%s177] sm:$0xff]
        %v213 = vld [vmem:[%s186] sm:$0xff]
        %v214 = vlaneseq
        %v215 = vshrl.u32 %v214, 7
        %v216 = vadd.s32 %v215, 8
        %v217 = vcombine.high %v213, %v213
        %v219 = vunpack.c.l.s4 1966171168
        %v220 = vunpack.c.0.s8 %v219
        %v221 = vlaneseq
        %v222 = vshrl.u32 %v221, 7
        %v223 = vsub.s32 %v220, %v222
        %v224 = vrot.slane %v213, %v223
        %v226 = vunpack.c.l.s4 1966171168
        %v227 = vunpack.c.0.s8 %v226
        %v228 = vlaneseq
        %v229 = vshrl.u32 %v228, 7
        %v230 = vsub.s32 %v227, %v229
        %v231 = vrot.slane %v217, %v230
        %v232 = vcombine.high %v224, %v224
        %v233 = vcombine.high %v231, %v231
        %v235 = vunpack.c.l.s4 1966171168
        %v236 = vunpack.c.0.s8 %v235
        %v237 = vlaneseq
        %v238 = vshrl.u32 %v237, 7
        %v239 = vsub.s32 %v236, %v238
        %v240 = vrot.slane %v224, %v239
        %v242 = vunpack.c.l.s4 1966171168
        %v243 = vunpack.c.0.s8 %v242
        %v244 = vlaneseq
        %v245 = vshrl.u32 %v244, 7
        %v246 = vsub.s32 %v243, %v245
        %v247 = vrot.slane %v231, %v246
        %v249 = vunpack.c.l.s4 1966171168
        %v250 = vunpack.c.0.s8 %v249
        %v251 = vlaneseq
        %v252 = vshrl.u32 %v251, 7
        %v253 = vsub.s32 %v250, %v252
        %v254 = vrot.slane %v232, %v253
        %v256 = vunpack.c.l.s4 1966171168
        %v257 = vunpack.c.0.s8 %v256
        %v258 = vlaneseq
        %v259 = vshrl.u32 %v258, 7
        %v260 = vsub.s32 %v257, %v259
        %v261 = vrot.slane %v233, %v260
        %v262 = vcombine.high %v240, %v240
        %v263 = vcombine.high %v247, %v247
        %v264 = vcombine.high %v254, %v254
        %v265 = vcombine.high %v261, %v261
        %v266 = vlaneseq
        %v267 = vshrl.u32 %v266, 7
        %v268 = vsub.s32 0, %v267
        %v269 = vrot.slane %v240, %v268
        %v270 = vlaneseq
        %v271 = vshrl.u32 %v270, 7
        %v272 = vsub.s32 0, %v271
        %v273 = vrot.slane %v254, %v272
        %v274 = vlaneseq
        %v275 = vshrl.u32 %v274, 7
        %v276 = vsub.s32 0, %v275
        %v277 = vrot.slane %v262, %v276
        %v278 = vlaneseq
        %v279 = vshrl.u32 %v278, 7
        %v280 = vsub.s32 0, %v279
        %v281 = vrot.slane %v264, %v280
        %v282 = vlaneseq
        %v283 = vshrl.u32 %v282, 7
        %v284 = vsub.s32 0, %v283
        %v285 = vrot.slane %v247, %v284
        %v286 = vlaneseq
        %v287 = vshrl.u32 %v286, 7
        %v288 = vsub.s32 0, %v287
        %v289 = vrot.slane %v261, %v288
        %v290 = vlaneseq
        %v291 = vshrl.u32 %v290, 7
        %v292 = vsub.s32 0, %v291
        %v293 = vrot.slane %v263, %v292
        %v294 = vlaneseq
        %v295 = vshrl.u32 %v294, 7
        %v296 = vsub.s32 0, %v295
        %v297 = vrot.slane %v265, %v296
        %vm298 = vcmp.eq.s32.totalorder %v269, %v215
        %vm299 = vcmp.eq.s32.totalorder %v269, %v216
        %vm300 = vcmp.eq.s32.totalorder %v273, %v215
        %vm301 = vcmp.eq.s32.totalorder %v273, %v216
        %vm302 = vcmp.eq.s32.totalorder %v277, %v215
        %vm303 = vcmp.eq.s32.totalorder %v277, %v216
        %vm304 = vcmp.eq.s32.totalorder %v281, %v215
        %vm305 = vcmp.eq.s32.totalorder %v281, %v216
        %vm306 = vcmp.eq.s32.totalorder %v285, %v215
        %vm307 = vcmp.eq.s32.totalorder %v285, %v216
        %vm308 = vcmp.eq.s32.totalorder %v289, %v215
        %vm309 = vcmp.eq.s32.totalorder %v289, %v216
        %vm310 = vcmp.eq.s32.totalorder %v293, %v215
        %vm311 = vcmp.eq.s32.totalorder %v293, %v216
        %vm312 = vcmp.eq.s32.totalorder %v297, %v215
        %vm313 = vcmp.eq.s32.totalorder %v297, %v216
        %v314 = vlaneseq
        %v315 = vshrl.u32 %v314, 7
        %v316 = vsub.s32 0, %v315
        %v317 = vrot.slane %v212, %v316
        %319 = vbcast.lane.b32.xlu0 %v317, 256
        %v320 = vpop.permute.xlu0 %319
        %s322 = sor.u32 256, 8
        %323 = vbcast.lane.b32.xlu0 %v317, %s322
        %v324 = vpop.permute.xlu0 %323
        %v325 = vlaneseq
        %v326 = vshrl.u32 %v325, 7
        %v327 = vsub.s32 1, %v326
        %v328 = vrot.slane %v212, %v327
        %330 = vbcast.lane.b32.xlu0 %v328, 256
        %v331 = vpop.permute.xlu0 %330
        %s333 = sor.u32 256, 8
        %334 = vbcast.lane.b32.xlu0 %v328, %s333
        %v335 = vpop.permute.xlu0 %334
        %v336 = vlaneseq
        %v337 = vshrl.u32 %v336, 7
        %v338 = vsub.s32 2, %v337
        %v339 = vrot.slane %v212, %v338
        %341 = vbcast.lane.b32.xlu0 %v339, 256
        %v342 = vpop.permute.xlu0 %341
        %s344 = sor.u32 256, 8
        %345 = vbcast.lane.b32.xlu0 %v339, %s344
        %v346 = vpop.permute.xlu0 %345
        %v347 = vlaneseq
        %v348 = vshrl.u32 %v347, 7
        %v349 = vsub.s32 3, %v348
        %v350 = vrot.slane %v212, %v349
        %352 = vbcast.lane.b32.xlu0 %v350, 256
        %v353 = vpop.permute.xlu0 %352
        %s355 = sor.u32 256, 8
        %356 = vbcast.lane.b32.xlu0 %v350, %s355
        %v357 = vpop.permute.xlu0 %356
        %v358 = vlaneseq
        %v359 = vshrl.u32 %v358, 7
        %v360 = vsub.s32 4, %v359
        %v361 = vrot.slane %v212, %v360
        %363 = vbcast.lane.b32.xlu0 %v361, 256
        %v364 = vpop.permute.xlu0 %363
        %s366 = sor.u32 256, 8
        %367 = vbcast.lane.b32.xlu0 %v361, %s366
        %v368 = vpop.permute.xlu0 %367
        %v369 = vlaneseq
        %v370 = vshrl.u32 %v369, 7
        %v371 = vsub.s32 5, %v370
        %v372 = vrot.slane %v212, %v371
        %374 = vbcast.lane.b32.xlu0 %v372, 256
        %v375 = vpop.permute.xlu0 %374
        %s377 = sor.u32 256, 8
        %378 = vbcast.lane.b32.xlu0 %v372, %s377
        %v379 = vpop.permute.xlu0 %378
        %v380 = vlaneseq
        %v381 = vshrl.u32 %v380, 7
        %v382 = vsub.s32 6, %v381
        %v383 = vrot.slane %v212, %v382
        %385 = vbcast.lane.b32.xlu0 %v383, 256
        %v386 = vpop.permute.xlu0 %385
        %s388 = sor.u32 256, 8
        %389 = vbcast.lane.b32.xlu0 %v383, %s388
        %v390 = vpop.permute.xlu0 %389
        %v391 = vlaneseq
        %v392 = vshrl.u32 %v391, 7
        %v393 = vsub.s32 7, %v392
        %v394 = vrot.slane %v212, %v393
        %396 = vbcast.lane.b32.xlu0 %v394, 256
        %v397 = vpop.permute.xlu0 %396
        %s399 = sor.u32 256, 8
        %400 = vbcast.lane.b32.xlu0 %v394, %s399
        %v401 = vpop.permute.xlu0 %400
        %v402 = vsel %vm298, %v320, 0.0
        %v403 = vsel %vm299, %v324, 0.0
        %v404 = vsel %vm300, %v331, 0.0
        %v405 = vsel %vm301, %v335, 0.0
        %v406 = vsel %vm302, %v342, 0.0
        %v407 = vsel %vm303, %v346, 0.0
        %v408 = vsel %vm304, %v353, 0.0
        %v409 = vsel %vm305, %v357, 0.0
        %v410 = vsel %vm306, %v364, 0.0
        %v411 = vsel %vm307, %v368, 0.0
        %v412 = vsel %vm308, %v375, 0.0
        %v413 = vsel %vm309, %v379, 0.0
        %v414 = vsel %vm310, %v386, 0.0
        %v415 = vsel %vm311, %v390, 0.0
        %v416 = vsel %vm312, %v397, 0.0
        %v417 = vsel %vm313, %v401, 0.0
        %vm418 = vcmask 1041408
        %v419 = vsel %vm418, %v403, 0.0
        %v420 = vadd.f32 %v402, %v419
        %v421 = vrot.slane %v420, 4
        %v422 = vadd.f32 %v420, %v421
        %v423 = vrot.slane %v422, 2
        %v424 = vadd.f32 %v422, %v423
        %v425 = vrot.slane %v424, 1
        %v426 = vadd.f32 %v424, %v425
        %v427 = vsel %vm418, %v405, 0.0
        %v428 = vadd.f32 %v404, %v427
        %v429 = vrot.slane %v428, 4
        %v430 = vadd.f32 %v428, %v429
        %v431 = vrot.slane %v430, 2
        %v432 = vadd.f32 %v430, %v431
        %v433 = vrot.slane %v432, 1
        %v434 = vadd.f32 %v432, %v433
        %v435 = vsel %vm418, %v407, 0.0
        %v436 = vadd.f32 %v406, %v435
        %v437 = vrot.slane %v436, 4
        %v438 = vadd.f32 %v436, %v437
        %v439 = vrot.slane %v438, 2
        %v440 = vadd.f32 %v438, %v439
        %v441 = vrot.slane %v440, 1
        %v442 = vadd.f32 %v440, %v441
        %v443 = vsel %vm418, %v409, 0.0
        %v444 = vadd.f32 %v408, %v443
        %v445 = vrot.slane %v444, 4
        %v446 = vadd.f32 %v444, %v445
        %v447 = vrot.slane %v446, 2
        %v448 = vadd.f32 %v446, %v447
        %v449 = vrot.slane %v448, 1
        %v450 = vadd.f32 %v448, %v449
        %v451 = vsel %vm418, %v411, 0.0
        %v452 = vadd.f32 %v410, %v451
        %v453 = vrot.slane %v452, 4
        %v454 = vadd.f32 %v452, %v453
        %v455 = vrot.slane %v454, 2
        %v456 = vadd.f32 %v454, %v455
        %v457 = vrot.slane %v456, 1
        %v458 = vadd.f32 %v456, %v457
        %v459 = vsel %vm418, %v413, 0.0
        %v460 = vadd.f32 %v412, %v459
        %v461 = vrot.slane %v460, 4
        %v462 = vadd.f32 %v460, %v461
        %v463 = vrot.slane %v462, 2
        %v464 = vadd.f32 %v462, %v463
        %v465 = vrot.slane %v464, 1
        %v466 = vadd.f32 %v464, %v465
        %v467 = vsel %vm418, %v415, 0.0
        %v468 = vadd.f32 %v414, %v467
        %v469 = vrot.slane %v468, 4
        %v470 = vadd.f32 %v468, %v469
        %v471 = vrot.slane %v470, 2
        %v472 = vadd.f32 %v470, %v471
        %v473 = vrot.slane %v472, 1
        %v474 = vadd.f32 %v472, %v473
        %v475 = vsel %vm418, %v417, 0.0
        %v476 = vadd.f32 %v416, %v475
        %v477 = vrot.slane %v476, 4
        %v478 = vadd.f32 %v476, %v477
        %v479 = vrot.slane %v478, 2
        %v480 = vadd.f32 %v478, %v479
        %v481 = vrot.slane %v480, 1
        %v482 = vadd.f32 %v480, %v481
        %v483 = vld [vmem:[#allocation7] sm:$0xff]
        %vm492 = vcmask 1041409
        %v493 = vsel %vm492, %v434, %v426
        %vm494 = vcmask 1042434
        %v495 = vsel %vm494, %v442, %v493
        %vm496 = vcmask 1043459
        %v497 = vsel %vm496, %v450, %v495
        %vm498 = vcmask 1044484
        %v499 = vsel %vm498, %v458, %v497
        %vm500 = vcmask 1045509
        %v501 = vsel %vm500, %v466, %v499
        %vm502 = vcmask 1046534
        %v503 = vsel %vm502, %v474, %v501
        %vm504 = vcmask 1047559
        %v505 = vsel %vm504, %v482, %v503
        %v507 = vmul.f32 %v483, %v505
        %508 = vst [vmem:[#allocation7] sm:$0xff] %v507
        // Predicated region
        $region41: #{tpu_custom_call.1} parent=27 // pred_check
          %p509 = pneg %p106
        $region42: #{tpu_custom_call.1} parent=27 // pred_check_branch
          %511 = sbr.rel (%p509) target = $region44
        $region43: #{tpu_custom_call.1} parent=27 // pred_region
          %s513 = ssub.s32 128, 128
          %514 = vsyncadd [#allocation4], %s513
          %s515 = smul.addr %s24, 128
          %s516 = scalar_lea.hbm %s2, %s515
          %s518 = sshll.u32 [#allocation7], 4
          %s519 = int_to_ptr.vmem [resolvable:$true] %s518
          %521 = dma.vmem_to_hbm [thread:$0]  %s519, 128, %s516, [#allocation4]
        $region44: #{tpu_custom_call.1} parent=27 // pred_fallthru
          _
        // Predicated region
        $region45: #{tpu_custom_call.1} parent=27 // pred_check
          %p522 = pneg %p106
        $region46: #{tpu_custom_call.1} parent=27 // pred_check_branch
          %524 = sbr.rel (%p522) target = $region48
        $region47: #{tpu_custom_call.1} parent=27 // pred_region
          %525 = dma.done [#allocation4], 128
        $region48: #{tpu_custom_call.1} parent=27 // pred_fallthru
          _
      $region28: #{tpu_custom_call.1} parent=5 // pred_fallthru
        _
      %p526 = scmp.le.s32.totalorder 2, %s15
      // Predicated region
      $region49: #{tpu_custom_call.1} parent=5 // pred_check
        %p527 = pneg %p526
      $region50: #{tpu_custom_call.1} parent=5 // pred_check_branch
        %529 = sbr.rel (%p527) target = $region52
      $region51: #{tpu_custom_call.1} parent=5 // pred_region
        %s530 = ssub.s32 %s15, 2
      $region52: #{tpu_custom_call.1} parent=5 // pred_fallthru
        _
    $region6: #{tpu_custom_call.1} parent=1 // loop_footer
      %s19 = sadd.s32 1, %s15
    $region7: #{tpu_custom_call.1} parent=1 // loop_footer_branch
      %14 = sbr.rel target = $region3
    $region8: #{tpu_custom_call.1} parent=1 // loop_exit
      _
    %531 = vsyncpa [#allocation3], 1
    %s532 = scalar_lea.sflag [#allocation3], 1
    %533 = vsyncpa %s532, 1
    %534 = vsyncpa [#allocation6], 1
    %s535 = scalar_lea.sflag [#allocation6], 1
    %536 = vsyncpa %s535, 1
    %537 = vsyncpa [#allocation4], 1
    %s538 = scalar_lea.sflag [#allocation4], 1
    %539 = vsyncpa %s538, 1

</llo_original>
